<compile_context>
chip_gen: v7x
topology: tpu7x:2x2x1
jax: 0.10.0
libtpu: 0.0.40
codegen_flags: <defaults>
</compile_context>

<pallas_src>
import functools

import jax
import jax.numpy as jnp
from jax import lax
from jax.experimental import pallas as pl
from jax.experimental.pallas import tpu as pltpu


def _round_up(x, m):
    return ((x + m - 1) // m) * m


def _vmem_capacity_bytes():
    try:
        cap = getattr(pltpu.get_tpu_info(), "vmem_capacity_bytes", None)
        if cap:
            return int(cap)
    except Exception:
        pass
    return 64 * 1024 * 1024  # conservative fallback: v7x per-core VMEM


def _choose_tiles(B, S, H, itemsize):
    """Pick (b_tile, s_tile, vmem_limit_bytes) with explicit VMEM accounting.

    Accounted per call: x block (double buffered), out block (double
    buffered, f32), (b_tile, 8, H) f32 accumulator scratch, ~2 chunk-sized
    f32 cast temps, plus a compiler-scratch margin.
    """
    cap = _vmem_capacity_bytes()
    vmem_limit = (cap * 3) // 4  # 48 MiB on v7x (64 MiB phys), 96 MiB on v5e/v6e (128 MiB)

    if B <= 8:
        b_tile = B
    else:
        # >= 2 blocks on the "parallel" B axis so both v7x TensorCores get work.
        b_tile = min(128, _round_up(-(-B // 2), 8))
        # TODO(synk): for B <= 8 on v7x the S reduction could be split across
        # two partial accumulators to use both cores; not worth it at tiny B.

    s_cap = (S // 8) * 8 if S >= 8 else S

    max_s = 0
    while True:
        acc_bytes = b_tile * 8 * H * 4
        fixed = (2 * b_tile * H * 4        # out block, double buffered (f32)
                 + acc_bytes               # accumulator scratch
                 + 2 * acc_bytes           # chunk / cast temp headroom
                 + (2 << 20))              # Mosaic internal scratch margin
        x_budget = vmem_limit - fixed
        max_s = 0
        if x_budget > 0:
            max_s = (x_budget // (2 * b_tile * H * itemsize)) // 8 * 8
        if max_s >= 8 or b_tile <= 8:
            break
        b_tile = max(8, ((b_tile // 2) + 7) // 8 * 8)  # shrink B tile, retry

    if max_s < 8:
        max_s = 8  # pathological H (tens of thousands); overshoot knowingly

    s_tile = min(max_s, s_cap) if S >= 8 else S
    return b_tile, s_tile, vmem_limit


def _seq_sum_kernel(x_ref, out_ref, acc_ref, *, seq_len, s_tile):
    """Grid = (B tiles ["parallel"], S tiles ["arbitrary" reduction]).

    x_ref  : (b_tile, s_tile, H)  encoder-output tile (input dtype, HBM stream)
    out_ref: (b_tile, H) f32      sum over the full S axis (resident across S)
    acc_ref: (b_tile, 8, H) f32   sublane-packed running partial sums
    """
    if s_tile < 8:
        # Only possible when S itself is < 8: one tiny block covers all of S.
        out_ref[...] = jnp.sum(x_ref[...].astype(jnp.float32), axis=1)
        return

    s = pl.program_id(1)
    n_s_blocks = -(-seq_len // s_tile)
    rem = seq_len - (n_s_blocks - 1) * s_tile  # valid rows in the last S block

    @pl.when(s == 0)
    def _():
        acc_ref[...] = jnp.zeros_like(acc_ref)

    def accumulate(valid_rows):
        # valid_rows is a Python int.  Accumulate one 8-sublane group at a
        # time: VPU-only adds, bounded (b_tile, 8, H) f32 cast temps, and no
        # cross-sublane XLU work on the hot path.
        n_full = valid_rows // 8
        tail = valid_rows % 8
        if n_full > 0:
            if n_full <= 8:
                for j in range(n_full):  # static unroll, static slices
                    acc_ref[...] += x_ref[:, j * 8:(j + 1) * 8, :].astype(jnp.float32)
            else:
                def body(j, carry):
                    start = pl.multiple_of(j * 8, 8)
                    acc_ref[...] += x_ref[:, pl.ds(start, 8), :].astype(jnp.float32)
                    return carry

                lax.fori_loop(0, n_full, body, 0)
        if tail:
            # Ragged last group: rows >= tail in this group are block padding.
            chunk = x_ref[:, pl.ds(n_full * 8, 8), :].astype(jnp.float32)
            row = lax.broadcasted_iota(jnp.int32, chunk.shape, 1)
            acc_ref[...] += jnp.where(row < tail, chunk, 0.0)

    if rem == s_tile:            # S % s_tile == 0: every block is full
        accumulate(s_tile)
    else:
        @pl.when(s < n_s_blocks - 1)
        def _():
            accumulate(s_tile)

        @pl.when(s == n_s_blocks - 1)
        def _():
            accumulate(rem)

    @pl.when(s == n_s_blocks - 1)
    def _():
        # One cross-sublane collapse per B tile, off the hot loop.
        out_ref[...] = jnp.sum(acc_ref[...], axis=1)


def forecast_decoder_forward(encoder_outputs, wq, bq, wo, bo, forecast_horizon,
                             use_pallas=None):
    """encoder_outputs: (B, S, H) -> (B, 1, forecast_horizon)."""
    B, S, H = encoder_outputs.shape
    assert wq.shape == (H, H) and bq.shape == (1, H)
    assert wo.shape == (H, 1) and bo.shape == (1, 1)

    if use_pallas is None:
        # Tiny problems / narrow H waste vregs & pipeline prologue; let XLA fuse.
        use_pallas = (H % 128 == 0) and (B * S * H >= (1 << 18))

    if use_pallas:
        b_tile, s_tile, vmem_limit = _choose_tiles(B, S, H,
                                                   encoder_outputs.dtype.itemsize)
        grid = (-(-B // b_tile), -(-S // s_tile))
        ctx_sum = pl.pallas_call(
            functools.partial(_seq_sum_kernel, seq_len=S, s_tile=s_tile),
            out_shape=jax.ShapeDtypeStruct((B, H), jnp.float32),
            grid_spec=pltpu.PrefetchScalarGridSpec(
                num_scalar_prefetch=0,
                grid=grid,
                in_specs=[pl.BlockSpec((b_tile, s_tile, H),
                                       lambda b, s: (b, s, 0))],
                out_specs=pl.BlockSpec((b_tile, H), lambda b, s: (b, 0)),
                scratch_shapes=[pltpu.VMEM((b_tile, 8, H), jnp.float32)],
            ),
            compiler_params=pltpu.CompilerParams(
                dimension_semantics=("parallel", "arbitrary"),
                vmem_limit_bytes=int(vmem_limit),
            ),
        )(encoder_outputs)
    else:
        ctx_sum = jnp.sum(encoder_outputs.astype(jnp.float32), axis=1)

    # Tiny (B, H) epilogue in XLA: the kernel never holds the H*H weight in
    # VMEM (saves 2*H^2*4 bytes of double-buffered weight on every chip).
    context = ctx_sum * (1.0 / S)                                        # mean over S
    query = jnp.tanh(context @ wq.astype(jnp.float32) + bq.astype(jnp.float32))
    pred = query @ wo.astype(jnp.float32) + bo.astype(jnp.float32)       # (B, 1)
    # context is loop-invariant in the PyTorch horizon loop -> all steps equal.
    forecasts = jnp.broadcast_to(pred, (B, forecast_horizon))
    return forecasts[:, None, :].astype(encoder_outputs.dtype)


def init_params(key, hidden_size):
    """nn.Linear-style uniform(-1/sqrt(H), 1/sqrt(H)); weights stored (in, out)."""
    k1, k2, k3, k4 = jax.random.split(key, 4)
    bound = 1.0 / jnp.sqrt(jnp.float32(hidden_size))
    wq = jax.random.uniform(k1, (hidden_size, hidden_size), jnp.float32, -bound, bound)
    bq = jax.random.uniform(k2, (1, hidden_size), jnp.float32, -bound, bound)
    wo = jax.random.uniform(k3, (hidden_size, 1), jnp.float32, -bound, bound)
    bo = jax.random.uniform(k4, (1, 1), jnp.float32, -bound, bound)
    return wq, bq, wo, bo


def reference_forward(encoder_outputs, wq, bq, wo, bo, forecast_horizon):
    """Pure-JAX reference matching the PyTorch forward literally (with the loop)."""
    context = jnp.mean(encoder_outputs, axis=1)            # (B, H)
    preds = []
    for _ in range(forecast_horizon):
        query = jnp.tanh(context @ wq + bq)                # (B, H)
        pred = query @ wo + bo                             # (B, 1)
        preds.append(pred)
    forecasts = jnp.concatenate(preds, axis=1)             # (B, horizon)
    return forecasts[:, None, :]


if __name__ == "__main__":
    forecast_horizon = 16
    key = jax.random.PRNGKey(0)
    k_x1, k_x2, k_p = jax.random.split(key, 3)

    # Force the Pallas path so the kernel itself is exercised at demo shapes
    # (auto-dispatch would pick the fused-XLA path for such tiny inputs).
    fwd = jax.jit(functools.partial(forecast_decoder_forward,
                                    forecast_horizon=forecast_horizon,
                                    use_pallas=True))

    # Case 1: canonical small shapes (B=2, S=8, H=32) -- tiles divide exactly.
    batch, seq_len, hidden = 2, 8, 32
    x1 = jax.random.normal(k_x1, (batch, seq_len, hidden), jnp.float32)
    wq, bq, wo, bo = init_params(k_p, hidden)
    out1 = jax.block_until_ready(fwd(x1, wq, bq, wo, bo))
    ref1 = reference_forward(x1, wq, bq, wo, bo, forecast_horizon)
    assert out1.shape == (batch, 1, forecast_horizon), out1.shape
    assert jnp.allclose(out1, ref1, atol=1e-5, rtol=1e-5), \
        float(jnp.max(jnp.abs(out1 - ref1)))

    # Case 2: ragged B and S (B=10, S=20) -- exercises the in-kernel masking of
    # the partial last S block and the masked partial-B output stores (no pad).
    x2 = jax.random.normal(k_x2, (10, 20, hidden), jnp.float32)
    out2 = jax.block_until_ready(fwd(x2, wq, bq, wo, bo))
    ref2 = reference_forward(x2, wq, bq, wo, bo, forecast_horizon)
    assert out2.shape == (10, 1, forecast_horizon), out2.shape
    assert jnp.allclose(out2, ref2, atol=1e-5, rtol=1e-5), \
        float(jnp.max(jnp.abs(out2 - ref2)))

    print("KERNEL_OK")
</pallas_src>

<mosaic_0001>
module attributes {stable_mosaic.version = 11 : i64} {
  func.func @_seq_sum_kernel(%arg0: i32, %arg1: i32, %arg2: memref<2x8x32xf32, #tpu.memory_space<vmem>>, %arg3: memref<2x32xf32, #tpu.memory_space<vmem>>, %arg4: memref<2x8x32xf32, #tpu.memory_space<vmem>>) attributes {dimension_semantics = [#tpu.dimension_semantics<parallel>, #tpu.dimension_semantics<arbitrary>], iteration_bounds = array<i64: 1, 1>, scalar_prefetch = 0 : i64, scratch_operands = 1 : i64, tpu.core_type = #tpu.core_type<tc>, window_params = [{transform_indices = @transform_0, window_bounds = array<i64: 2, 8, 32>}, {transform_indices = @transform_1, window_bounds = array<i64: 2, 32>}]} {
    %c0_i32 = arith.constant 0 : i32
    %0 = arith.cmpi eq, %arg1, %c0_i32 : i32
    %1 = arith.extui %0 : i1 to i32
    %c0_i32_0 = arith.constant 0 : i32
    %2 = arith.cmpi ne, %1, %c0_i32_0 : i32
    scf.if %2 {
      %cst = arith.constant 0.000000e+00 : f32
      %10 = vector.broadcast %cst : f32 to vector<2x8x32xf32>
      %c0_11 = arith.constant 0 : index
      %c0_12 = arith.constant 0 : index
      %c0_13 = arith.constant 0 : index
      %11 = vector.load %arg4[%c0_11, %c0_12, %c0_13] : memref<2x8x32xf32, #tpu.memory_space<vmem>>, vector<2x8x32xf32>
      tpu.vector_store %arg4[%c0_11, %c0_12, %c0_13], %10 {strides = array<i32>} : memref<2x8x32xf32, #tpu.memory_space<vmem>>, vector<2x8x32xf32>,
    } else {
    }
    %c0 = arith.constant 0 : index
    %c0_1 = arith.constant 0 : index
    %c0_2 = arith.constant 0 : index
    %3 = vector.load %arg4[%c0, %c0_1, %c0_2] : memref<2x8x32xf32, #tpu.memory_space<vmem>>, vector<2x8x32xf32>
    %c0_3 = arith.constant 0 : index
    %c0_4 = arith.constant 0 : index
    %c0_5 = arith.constant 0 : index
    %4 = vector.load %arg2[%c0_3, %c0_4, %c0_5] : memref<2x8x32xf32, #tpu.memory_space<vmem>>, vector<2x8x32xf32>
    %5 = arith.addf %3, %4 : vector<2x8x32xf32>
    %c0_6 = arith.constant 0 : index
    %c0_7 = arith.constant 0 : index
    %c0_8 = arith.constant 0 : index
    %6 = vector.load %arg4[%c0_6, %c0_7, %c0_8] : memref<2x8x32xf32, #tpu.memory_space<vmem>>, vector<2x8x32xf32>
    tpu.vector_store %arg4[%c0_6, %c0_7, %c0_8], %5 {strides = array<i32>} : memref<2x8x32xf32, #tpu.memory_space<vmem>>, vector<2x8x32xf32>,
    %c0_i32_9 = arith.constant 0 : i32
    %7 = arith.cmpi eq, %arg1, %c0_i32_9 : i32
    %8 = arith.extui %7 : i1 to i32
    %c0_i32_10 = arith.constant 0 : i32
    %9 = arith.cmpi ne, %8, %c0_i32_10 : i32
    scf.if %9 {
      %c0_11 = arith.constant 0 : index
      %c0_12 = arith.constant 0 : index
      %c0_13 = arith.constant 0 : index
      %10 = vector.load %arg4[%c0_11, %c0_12, %c0_13] : memref<2x8x32xf32, #tpu.memory_space<vmem>>, vector<2x8x32xf32>
      %cst = arith.constant dense<0.000000e+00> : vector<2x32xf32>
      %11 = vector.multi_reduction <add>, %10, %cst [1] : vector<2x8x32xf32> to vector<2x32xf32>
      %c0_14 = arith.constant 0 : index
      %c0_15 = arith.constant 0 : index
      %12 = vector.load %arg3[%c0_14, %c0_15] : memref<2x32xf32, #tpu.memory_space<vmem>>, vector<2x32xf32>
      tpu.vector_store %arg3[%c0_14, %c0_15], %11 {strides = array<i32>} : memref<2x32xf32, #tpu.memory_space<vmem>>, vector<2x32xf32>,
    } else {
    }
    return
  }
  func.func @transform_0(%arg0: i32, %arg1: i32) -> (i32, i32, i32) {
    %c0_i32 = arith.constant 0 : i32
    %c0_i32_0 = arith.constant 0 : i32
    return %arg0, %arg1, %c0_i32 : i32, i32, i32
  }
  func.func @transform_1(%arg0: i32, %arg1: i32) -> (i32, i32) {
    %c0_i32 = arith.constant 0 : i32
    %c0_i32_0 = arith.constant 0 : i32
    return %arg0, %c0_i32 : i32, i32
  }
}

</mosaic_0001>

<llo_original>
// kernel: forecast_decoder_forward.1
$region0: #{forecast_decoder_forward.1}
  #allocation0 [shape = 'u32[]', space=smem, size = 0x4, offset = 0x4, fixed_abs, tag = 'smem constant byte address 0x4 - core index']
  #allocation1 [shape = 'u32[144,128]{1,0:T(1,128)}', space=vmem, size = 0x12000, scoped, tag = 'internal scratch']
  #allocation2 [shape = 'f32[2,8,32]{2,1,0:T(8,128)}', space=vmem, size = 0x2000, scoped, tag = 'scratch operand']
  %s0 = inlined_call_operand.hbm [shape: f32[2,8,32], index: 0, kind: input, shape index: {}]
  %s1 = inlined_call_operand.vmem [shape: f32[2,32], index: 1, kind: output, shape index: {}]
  %s2 = sld [smem:[#allocation0]]
  $region26: #{forecast_decoder_forward.1} parent=0
    _
  %s4 = ssub.s32 1, %s2
  %s5 = scalar_select 0, %s4, %s2
  $region1: #{forecast_decoder_forward.1} parent=0
    #allocation3 [shape = 'u8[8192]{0}', space=vmem, size = 0x2000, scoped, tag = 'input window, operand 0, single buffered']
    #allocation4 [shape = 's32[1]{0}', space=sflag, size = 0x4, scoped, tag = 'scoped memory for forecast_decoder_forward.1']
    %6 = vsyncpa [#allocation4], 0
    // Predicated region
    $region2: #{forecast_decoder_forward.1} parent=1 // pred_check
      _
    $region3: #{forecast_decoder_forward.1} parent=1 // pred_check_branch
      %8 = sbr.rel (0) target = $region5
    $region4: #{forecast_decoder_forward.1} parent=1 // pred_region
      %s10 = ssub.s32 256, 256
      %11 = vsyncadd [#allocation4], %s10
      %s12 = sshll.u32 [#allocation3], 4
      %s13 = int_to_ptr.vmem [resolvable:$true] %s12
      %18 = dma.hbm_to_vmem [thread:$0]  %s0, 256, %s13, [#allocation4], 128, 128, 8
    $region5: #{forecast_decoder_forward.1} parent=1 // pred_fallthru
      _
    // Predicated region
    $region6: #{forecast_decoder_forward.1} parent=1 // pred_check
      _
    $region7: #{forecast_decoder_forward.1} parent=1 // pred_check_branch
      %20 = sbr.rel (0) target = $region9
    $region8: #{forecast_decoder_forward.1} parent=1 // pred_region
      %21 = dma.done [#allocation4], 256
    $region9: #{forecast_decoder_forward.1} parent=1 // pred_fallthru
      _
    %p22 = scmp.eq.s32.totalorder 0, 0
    // Predicated region
    $region10: #{forecast_decoder_forward.1} parent=1 // pred_check
      %p23 = pneg %p22
    $region11: #{forecast_decoder_forward.1} parent=1 // pred_check_branch
      %25 = sbr.rel (%p23) target = $region13
    $region12: #{forecast_decoder_forward.1} parent=1 // pred_region
      %vm26 = vcmask 261120
      %27 = vst.msk [vmem:[#allocation2] sm:$0xff] %vm26, 0.0
      %28 = vst.msk [vmem:[#allocation2 + $0x8] sm:$0xff] %vm26, 0.0
    $region13: #{forecast_decoder_forward.1} parent=1 // pred_fallthru
      _
    %v29 = vld [vmem:[#allocation2] sm:$0xff]
    %v30 = vld [vmem:[#allocation2 + $0x8] sm:$0xff]
    %v31 = vld [vmem:[#allocation3] sm:$0xff]
    %v32 = vld [vmem:[#allocation3 + $0x8] sm:$0xff]
    %v33 = vadd.f32 %v29, %v31
    %v34 = vadd.f32 %v30, %v32
    %vm35 = vcmask 261120
    %36 = vst.msk [vmem:[#allocation2] sm:$0xff] %vm35, %v33
    %37 = vst.msk [vmem:[#allocation2 + $0x8] sm:$0xff] %vm35, %v34
    // Predicated region
    $region14: #{forecast_decoder_forward.1} parent=1 // pred_check
      %p38 = pneg %p22
    $region15: #{forecast_decoder_forward.1} parent=1 // pred_check_branch
      %40 = sbr.rel (%p38) target = $region17
    $region16: #{forecast_decoder_forward.1} parent=1 // pred_region
      %v41 = vld [vmem:[#allocation2] sm:$0xff]
      %v42 = vld [vmem:[#allocation2 + $0x8] sm:$0xff]
      %v43 = vsel %vm35, %v41, 0.0
      %v44 = vrot.slane %v43, 4
      %v45 = vadd.f32 %v43, %v44
      %v46 = vrot.slane %v45, 2
      %v47 = vadd.f32 %v45, %v46
      %v48 = vrot.slane %v47, 1
      %v49 = vadd.f32 %v47, %v48
      %v50 = vsel %vm35, %v42, 0.0
      %v51 = vrot.slane %v50, 4
      %v52 = vadd.f32 %v50, %v51
      %v53 = vrot.slane %v52, 2
      %v54 = vadd.f32 %v52, %v53
      %v55 = vrot.slane %v54, 1
      %v56 = vadd.f32 %v54, %v55
      %vm59 = vcmask 1041409
      %v60 = vsel %vm59, %v56, %v49
      %vm62 = vcmask 254976
      %63 = vst.msk [vmem:[%s1] sm:$0x3] %vm62, %v60
    $region17: #{forecast_decoder_forward.1} parent=1 // pred_fallthru
      _
    // Predicated region
    $region18: #{forecast_decoder_forward.1} parent=1 // pred_check
      _
    $region19: #{forecast_decoder_forward.1} parent=1 // pred_check_branch
      %65 = sbr.rel (0) target = $region21
    $region20: #{forecast_decoder_forward.1} parent=1 // pred_region
      _
    $region21: #{forecast_decoder_forward.1} parent=1 // pred_fallthru
      _
    // Predicated region
    $region22: #{forecast_decoder_forward.1} parent=1 // pred_check
      _
    $region23: #{forecast_decoder_forward.1} parent=1 // pred_check_branch
      %67 = sbr.rel (0) target = $region25
    $region24: #{forecast_decoder_forward.1} parent=1 // pred_region
      _
    $region25: #{forecast_decoder_forward.1} parent=1 // pred_fallthru
      _
    %68 = vsyncpa [#allocation4], 1

</llo_original>
